<compile_context>
chip_gen: v7x
topology: tpu7x:2x2x1
jax: 0.10.0
libtpu: 0.0.40
codegen_flags: <defaults>
</compile_context>

<pallas_src>
import functools

import jax
import jax.numpy as jnp
from jax import lax
from jax.experimental import pallas as pl
from jax.experimental.pallas import tpu as pltpu


def _round_up(x, m):
    return (x + m - 1) // m * m


def _choose_tile(n, d):
    """Lane-dense square tile; larger tiles amortize per-step overhead, clamped by D."""
    t = 128 if n <= 128 else (256 if n <= 512 else 512)
    while t > 128 and t * d * 4 > (2 << 20):   # keep (T, D) input blocks <= 2 MiB
        t //= 2
    return t


def _inv_bandwidths(Xc, n_real, n_kernels, mul_factor, bandwidth):
    """Scalar reciprocals 1/(bw*mult_k); bw from closed-form sum of pairwise sq. dists.

    sum_{i,j} ||x_i - x_j||^2 = 2*N*sum_i ||x_i||^2 - 2*||sum_i x_i||^2  (real rows only).
    """
    if bandwidth is None:
        sq = jnp.sum(Xc * Xc, axis=-1)
        s = jnp.sum(Xc, axis=0)
        sum_l2 = 2.0 * n_real * jnp.sum(sq) - 2.0 * jnp.dot(s, s)
        denom = max(n_real * n_real - n_real, 1)          # guard N == 1
        bw = sum_l2 / denom
    else:
        bw = jnp.float32(bandwidth)
    mult = (mul_factor ** (jnp.arange(n_kernels) - n_kernels // 2)).astype(jnp.float32)
    return (1.0 / (bw * mult)).astype(jnp.float32)        # (n_kernels,) -> SMEM


def _sum_exp_kernels(neg_l2, inv_ref, n_kernels, mul_factor):
    """sum_k exp(neg_l2 * inv_k) with inv_k scalars in SMEM.

    mul_factor == 2: the k-th term is the (2^m)-th power of the widest-bandwidth
    exponential -> 1 EUP exp + (n_kernels-1) cheap VPU squarings (EUP was the
    saturating unit with 5 exps/element).  General mul_factor: plain exp loop.
    """
    if mul_factor == 2.0 and n_kernels > 1:
        e = jnp.exp(neg_l2 * inv_ref[n_kernels - 1])       # widest bandwidth
        acc = e
        p = e
        for _ in range(n_kernels - 1):                     # static unroll
            p = p * p                                      # e^(2^m)
            acc = acc + p
        return acc
    acc = jnp.exp(neg_l2 * inv_ref[0])
    for k in range(1, n_kernels):
        acc = acc + jnp.exp(neg_l2 * inv_ref[k])
    return acc


def _kernel_tile(xi, xj, sqi, sqj, inv_ref, n_kernels, mul_factor):
    """One (T, T) tile of the multi-bandwidth kernel matrix."""
    gram = lax.dot_general(                                # MXU, contract feature dim
        xi, xj,
        dimension_numbers=(((1,), (1,)), ((), ())),
        preferred_element_type=jnp.float32,
    )
    # -(||xi||^2 + ||xj||^2 - 2 xi.xj), clamped so l2 >= 0 (deliberate; rounding can
    # otherwise give exp > 1).
    neg_l2 = jnp.minimum(2.0 * gram - sqi - sqj, 0.0)
    return _sum_exp_kernels(neg_l2, inv_ref, n_kernels, mul_factor)


# ---------------------------------------------------------------------------
# RBF.forward : full (N, N) kernel matrix
# ---------------------------------------------------------------------------
def _rbf_tile_kernel(inv_ref, xi_ref, xj_ref, sqi_ref, sqj_ref, out_ref, *,
                     n_kernels, mul_factor):
    out_ref[...] = _kernel_tile(xi_ref[...], xj_ref[...], sqi_ref[...], sqj_ref[...],
                                inv_ref, n_kernels, mul_factor)


def rbf_forward(X, n_kernels=5, mul_factor=2.0, bandwidth=None):
    """Pallas equivalent of RBF.forward(X): returns the (N, N) kernel matrix."""
    X = jnp.asarray(X, jnp.float32)
    N, D = X.shape

    # Distances are translation invariant; centering avoids catastrophic cancellation
    # in the ||xi||^2 + ||xj||^2 - 2<xi,xj> expansion for offset-heavy data.
    Xc = X - jnp.mean(X, axis=0, keepdims=True)

    T = _choose_tile(N, D)
    Np = _round_up(N, T)
    nt = Np // T
    X_pad = jnp.pad(Xc, ((0, Np - N), (0, 0)))

    inv_over = _inv_bandwidths(Xc, N, n_kernels, mul_factor, bandwidth)

    sq_pad = jnp.sum(X_pad * X_pad, axis=-1)
    sq_row = sq_pad.reshape(Np, 1)                         # (T,1) row blocks
    sq_col = sq_pad.reshape(1, Np)                         # (1,T) col blocks (no transpose)

    n_exp = 1 if (mul_factor == 2.0 and n_kernels > 1) else n_kernels
    kernel = functools.partial(_rbf_tile_kernel, n_kernels=n_kernels, mul_factor=mul_factor)

    K_pad = pl.pallas_call(
        kernel,
        out_shape=jax.ShapeDtypeStruct((Np, Np), jnp.float32),
        grid=(nt, nt),
        in_specs=[
            pl.BlockSpec(memory_space=pltpu.MemorySpace.SMEM),   # inv_over scalars
            pl.BlockSpec((T, D), lambda i, j: (i, 0)),
            pl.BlockSpec((T, D), lambda i, j: (j, 0)),
            pl.BlockSpec((T, 1), lambda i, j: (i, 0)),
            pl.BlockSpec((1, T), lambda i, j: (0, j)),
        ],
        out_specs=pl.BlockSpec((T, T), lambda i, j: (i, j)),
        compiler_params=pltpu.CompilerParams(
            dimension_semantics=("parallel", "parallel"),
            vmem_limit_bytes=40 * 1024 * 1024,
        ),
        cost_estimate=pl.CostEstimate(
            flops=int(2 * Np * Np * D + 12 * Np * Np),
            transcendentals=int(n_exp * Np * Np),
            bytes_accessed=int((nt + 1) * Np * D * 4 + Np * Np * 4),
        ),
    )(inv_over, X_pad, X_pad, sq_row, sq_col)

    if Np == N:
        return K_pad
    return K_pad[:N, :N]


# ---------------------------------------------------------------------------
# MMDLoss.forward : fused reduction, K never materialized
# ---------------------------------------------------------------------------
def _mmd_tiled_kernel(inv_ref, xi_ref, xj_ref, sqi_ref, sqj_ref, wi_ref, wj_ref, out_ref, *,
                      n_kernels, mul_factor):
    j = pl.program_id(1)

    @pl.when(j == 0)
    def _():
        out_ref[...] = jnp.zeros_like(out_ref)

    k_tile = _kernel_tile(xi_ref[...], xj_ref[...], sqi_ref[...], sqj_ref[...],
                          inv_ref, n_kernels, mul_factor)
    out_ref[...] += jnp.sum(k_tile * wi_ref[...] * wj_ref[...])


def _mmd_resident_kernel(inv_ref, x_ref, sqr_ref, sqc_ref, wr_ref, wc_ref, out_ref, *,
                         n_kernels, mul_factor, tile):
    i = pl.program_id(0)
    j = pl.program_id(1)

    @pl.when(j == 0)
    def _():
        out_ref[...] = jnp.zeros_like(out_ref)

    ri = pl.multiple_of(i * tile, tile)
    rj = pl.multiple_of(j * tile, tile)
    xi = x_ref[pl.ds(ri, tile), :]
    xj = x_ref[pl.ds(rj, tile), :]
    sqi = sqr_ref[pl.ds(ri, tile), :]
    sqj = sqc_ref[:, pl.ds(rj, tile)]
    wi = wr_ref[pl.ds(ri, tile), :]
    wj = wc_ref[:, pl.ds(rj, tile)]

    k_tile = _kernel_tile(xi, xj, sqi, sqj, inv_ref, n_kernels, mul_factor)
    out_ref[...] += jnp.sum(k_tile * wi * wj)


def mmd_loss(X, Y, n_kernels=5, mul_factor=2.0, bandwidth=None, force_tiled=False):
    """Pallas equivalent of MMDLoss.forward(X, Y) (fused block-mean reduction)."""
    X = jnp.asarray(X, jnp.float32)
    Y = jnp.asarray(Y, jnp.float32)
    xs, ys = int(X.shape[0]), int(Y.shape[0])
    Z = jnp.concatenate([X, Y], axis=0)
    N, D = Z.shape

    Zc = Z - jnp.mean(Z, axis=0, keepdims=True)            # translation invariant

    T = _choose_tile(N, D)
    Np = _round_up(N, T)
    nt = Np // T
    Z_pad = jnp.pad(Zc, ((0, Np - N), (0, 0)))

    inv_over = _inv_bandwidths(Zc, N, n_kernels, mul_factor, bandwidth)

    sq_pad = jnp.sum(Z_pad * Z_pad, axis=-1)
    sq_row = sq_pad.reshape(Np, 1)
    sq_col = sq_pad.reshape(1, Np)

    # MMD = w^T K w with w = [1/xs ..., -1/ys ..., 0 on padding]; padding is thus
    # excluded automatically and no K slice / quadrant means are needed.
    w = jnp.concatenate([
        jnp.full((xs,), 1.0 / xs, jnp.float32),
        jnp.full((ys,), -1.0 / ys, jnp.float32),
        jnp.zeros((Np - N,), jnp.float32),
    ])
    w_row = w.reshape(Np, 1)
    w_col = w.reshape(1, Np)

    x_bytes = Np * D * 4
    # Resident-X only when the (double-buffered) panel comfortably fits every
    # generation's scoped VMEM (v7x has only 64 MiB physical per TC).
    resident = (not force_tiled) and x_bytes <= (8 << 20) and (T * D * 4) <= (2 << 20)

    out_shape = jax.ShapeDtypeStruct((nt, 8, 128), jnp.float32)   # per-row-tile partials
    out_spec = pl.BlockSpec((1, 8, 128), lambda i, j: (i, 0, 0))
    smem_spec = pl.BlockSpec(memory_space=pltpu.MemorySpace.SMEM)

    if resident:
        kernel = functools.partial(_mmd_resident_kernel, n_kernels=n_kernels,
                                   mul_factor=mul_factor, tile=T)
        in_specs = [
            smem_spec,
            pl.BlockSpec((Np, D), lambda i, j: (0, 0)),    # X loaded once, sliced in-kernel
            pl.BlockSpec((Np, 1), lambda i, j: (0, 0)),
            pl.BlockSpec((1, Np), lambda i, j: (0, 0)),
            pl.BlockSpec((Np, 1), lambda i, j: (0, 0)),
            pl.BlockSpec((1, Np), lambda i, j: (0, 0)),
        ]
        args = (inv_over, Z_pad, sq_row, sq_col, w_row, w_col)
        bytes_accessed = x_bytes + 4 * Np * 4 + nt * 8 * 128 * 4
    else:
        kernel = functools.partial(_mmd_tiled_kernel, n_kernels=n_kernels,
                                   mul_factor=mul_factor)
        in_specs = [
            smem_spec,
            pl.BlockSpec((T, D), lambda i, j: (i, 0)),
            pl.BlockSpec((T, D), lambda i, j: (j, 0)),
            pl.BlockSpec((T, 1), lambda i, j: (i, 0)),
            pl.BlockSpec((1, T), lambda i, j: (0, j)),
            pl.BlockSpec((T, 1), lambda i, j: (i, 0)),
            pl.BlockSpec((1, T), lambda i, j: (0, j)),
        ]
        args = (inv_over, Z_pad, Z_pad, sq_row, sq_col, w_row, w_col)
        bytes_accessed = (nt + 1) * Np * D * 4 + nt * 8 * 128 * 4

    n_exp = 1 if (mul_factor == 2.0 and n_kernels > 1) else n_kernels
    partials = pl.pallas_call(
        kernel,
        out_shape=out_shape,
        grid=(nt, nt),
        in_specs=in_specs,
        out_specs=out_spec,
        compiler_params=pltpu.CompilerParams(
            dimension_semantics=("parallel", "arbitrary"),   # row tiles parallel (megacore)
            vmem_limit_bytes=40 * 1024 * 1024,
        ),
        cost_estimate=pl.CostEstimate(
            flops=int(2 * Np * Np * D + 14 * Np * Np),
            transcendentals=int(n_exp * Np * Np),
            bytes_accessed=int(bytes_accessed),
        ),
    )(*args)

    # TODO(synk): exploit K symmetry (j >= i tiles weighted 2x) with a triangular grid
    # for a further ~2x on the compute-bound regime.
    return jnp.sum(partials[:, 0, 0])


# ---------------------------------------------------------------------------
# Pure-JAX references (mirror the PyTorch module exactly).
# ---------------------------------------------------------------------------
def _rbf_reference(X, n_kernels=5, mul_factor=2.0, bandwidth=None):
    X = X.astype(jnp.float32)
    N = X.shape[0]
    diff = X[:, None, :] - X[None, :, :]
    l2 = jnp.sum(diff * diff, axis=-1)
    bw = jnp.sum(l2) / (N * N - N) if bandwidth is None else jnp.float32(bandwidth)
    mult = (mul_factor ** (jnp.arange(n_kernels) - n_kernels // 2)).astype(jnp.float32)
    over = bw * mult
    return jnp.sum(jnp.exp(-l2[None, ...] / over[:, None, None]), axis=0)


def _mmd_reference(X, Y, n_kernels=5, mul_factor=2.0, bandwidth=None):
    Z = jnp.concatenate([X, Y], axis=0)
    K = _rbf_reference(Z, n_kernels, mul_factor, bandwidth)
    xs = X.shape[0]
    return jnp.mean(K[:xs, :xs]) - 2.0 * jnp.mean(K[:xs, xs:]) + jnp.mean(K[xs:, xs:])


if __name__ == "__main__":
    key = jax.random.PRNGKey(0)
    kx, ky, ka, kb = jax.random.split(key, 4)

    # Small shapes consistent with the module: 8 samples each, 32 features.
    X = jax.random.normal(kx, (8, 32), dtype=jnp.float32)
    Y = jax.random.normal(ky, (8, 32), dtype=jnp.float32) + 0.5

    # RBF.forward on the stacked samples (full kernel-matrix path).
    Z = jnp.concatenate([X, Y], axis=0)
    K = jax.block_until_ready(rbf_forward(Z))
    K_ref = _rbf_reference(Z)
    assert K.shape == (16, 16)
    assert jnp.allclose(K, K_ref, atol=1e-3, rtol=1e-3), "RBF kernel matrix mismatch"

    # MMDLoss.forward (fused Pallas reduction; resident-X path for this size).
    loss = jax.block_until_ready(mmd_loss(X, Y))
    loss_ref = _mmd_reference(X, Y)
    assert jnp.allclose(loss, loss_ref, atol=1e-3, rtol=1e-3), "MMD loss mismatch"

    # Larger, non-tile-aligned, mean-offset case exercising padding, multi-tile
    # accumulation, and both the resident and tiled fallback paths.
    A = jax.random.normal(ka, (200, 64), dtype=jnp.float32) * 1.5 + 3.0
    B = jax.random.normal(kb, (120, 64), dtype=jnp.float32)
    loss2 = jax.block_until_ready(mmd_loss(A, B))
    loss2_t = jax.block_until_ready(mmd_loss(A, B, force_tiled=True))
    loss2_ref = _mmd_reference(A, B)
    assert jnp.allclose(loss2, loss2_ref, atol=1e-3, rtol=1e-3), "MMD loss mismatch (resident)"
    assert jnp.allclose(loss2_t, loss2_ref, atol=1e-3, rtol=1e-3), "MMD loss mismatch (tiled)"

    print("KERNEL_OK")
</pallas_src>

<mosaic_0001>
module attributes {stable_mosaic.version = 11 : i64} {
  func.func @_rbf_tile_kernel(%arg0: i32, %arg1: i32, %arg2: memref<5xf32, #tpu.memory_space<smem>>, %arg3: memref<128x32xf32, #tpu.memory_space<vmem>>, %arg4: memref<128x32xf32, #tpu.memory_space<vmem>>, %arg5: memref<128x1xf32, #tpu.memory_space<vmem>>, %arg6: memref<1x128xf32, #tpu.memory_space<vmem>>, %arg7: memref<128x128xf32, #tpu.memory_space<vmem>>) attributes {dimension_semantics = [#tpu.dimension_semantics<parallel>, #tpu.dimension_semantics<parallel>], iteration_bounds = array<i64: 1, 1>, scalar_prefetch = 0 : i64, scratch_operands = 0 : i64, tpu.core_type = #tpu.core_type<tc>, window_params = [{transform_indices = @transform_0, window_bounds = array<i64: 5>}, {transform_indices = @transform_1, window_bounds = array<i64: 128, 32>}, {transform_indices = @transform_2, window_bounds = array<i64: 128, 32>}, {transform_indices = @transform_3, window_bounds = array<i64: 128, 1>}, {transform_indices = @transform_4, window_bounds = array<i64: 1, 128>}, {transform_indices = @transform_5, window_bounds = array<i64: 128, 128>}]} {
    %c0 = arith.constant 0 : index
    %c0_0 = arith.constant 0 : index
    %0 = vector.load %arg3[%c0, %c0_0] : memref<128x32xf32, #tpu.memory_space<vmem>>, vector<128x32xf32>
    %c0_1 = arith.constant 0 : index
    %c0_2 = arith.constant 0 : index
    %1 = vector.load %arg4[%c0_1, %c0_2] : memref<128x32xf32, #tpu.memory_space<vmem>>, vector<128x32xf32>
    %c0_3 = arith.constant 0 : index
    %c0_4 = arith.constant 0 : index
    %2 = vector.load %arg5[%c0_3, %c0_4] : memref<128x1xf32, #tpu.memory_space<vmem>>, vector<128x1xf32>
    %c0_5 = arith.constant 0 : index
    %c0_6 = arith.constant 0 : index
    %3 = vector.load %arg6[%c0_5, %c0_6] : memref<1x128xf32, #tpu.memory_space<vmem>>, vector<1x128xf32>
    %cst = arith.constant dense<0.000000e+00> : vector<128x128xf32>
    %4 = tpu.matmul %0, %1, %cst {dimension_numbers = #tpu.dot_dimension_numbers<[1], [1], [0], [0], [0, 0, 1, 0], [], []>} : vector<128x32xf32>, vector<128x32xf32>, vector<128x128xf32> -> vector<128x128xf32>
    %cst_7 = arith.constant 2.000000e+00 : f32
    %5 = vector.broadcast %cst_7 : f32 to vector<128x128xf32>
    %6 = arith.mulf %5, %4 : vector<128x128xf32>
    %7 = vector.broadcast %2 : vector<128x1xf32> to vector<128x128xf32>
    %8 = arith.subf %6, %7 : vector<128x128xf32>
    %9 = vector.broadcast %3 : vector<1x128xf32> to vector<128x128xf32>
    %10 = arith.subf %8, %9 : vector<128x128xf32>
    %cst_8 = arith.constant 0.000000e+00 : f32
    %11 = vector.broadcast %cst_8 : f32 to vector<128x128xf32>
    %12 = arith.minimumf %10, %11 : vector<128x128xf32>
    %c4 = arith.constant 4 : index
    %13 = memref.load %arg2[%c4] : memref<5xf32, #tpu.memory_space<smem>>
    %14 = vector.broadcast %13 : f32 to vector<128x128xf32>
    %15 = arith.mulf %12, %14 : vector<128x128xf32>
    %16 = math.exp %15 : vector<128x128xf32>
    %17 = arith.mulf %16, %16 : vector<128x128xf32>
    %18 = arith.addf %16, %17 : vector<128x128xf32>
    %19 = arith.mulf %17, %17 : vector<128x128xf32>
    %20 = arith.addf %18, %19 : vector<128x128xf32>
    %21 = arith.mulf %19, %19 : vector<128x128xf32>
    %22 = arith.addf %20, %21 : vector<128x128xf32>
    %23 = arith.mulf %21, %21 : vector<128x128xf32>
    %24 = arith.addf %22, %23 : vector<128x128xf32>
    %c0_9 = arith.constant 0 : index
    %c0_10 = arith.constant 0 : index
    %25 = vector.load %arg7[%c0_9, %c0_10] : memref<128x128xf32, #tpu.memory_space<vmem>>, vector<128x128xf32>
    tpu.vector_store %arg7[%c0_9, %c0_10], %24 {strides = array<i32>} : memref<128x128xf32, #tpu.memory_space<vmem>>, vector<128x128xf32>,
    return
  }
  func.func @transform_0(%arg0: i32, %arg1: i32) -> i32 {
    %c0_i32 = arith.constant 0 : i32
    %c0_i32_0 = arith.constant 0 : i32
    return %c0_i32 : i32
  }
  func.func @transform_1(%arg0: i32, %arg1: i32) -> (i32, i32) {
    %c0_i32 = arith.constant 0 : i32
    %c0_i32_0 = arith.constant 0 : i32
    return %arg0, %c0_i32 : i32, i32
  }
  func.func @transform_2(%arg0: i32, %arg1: i32) -> (i32, i32) {
    %c0_i32 = arith.constant 0 : i32
    %c0_i32_0 = arith.constant 0 : i32
    return %arg1, %c0_i32 : i32, i32
  }
  func.func @transform_3(%arg0: i32, %arg1: i32) -> (i32, i32) {
    %c0_i32 = arith.constant 0 : i32
    %c0_i32_0 = arith.constant 0 : i32
    return %arg0, %c0_i32 : i32, i32
  }
  func.func @transform_4(%arg0: i32, %arg1: i32) -> (i32, i32) {
    %c0_i32 = arith.constant 0 : i32
    %c0_i32_0 = arith.constant 0 : i32
    return %c0_i32, %arg1 : i32, i32
  }
  func.func @transform_5(%arg0: i32, %arg1: i32) -> (i32, i32) {
    %c0_i32 = arith.constant 0 : i32
    return %arg0, %arg1 : i32, i32
  }
}

</mosaic_0001>

<llo_original>
// kernel: tpu_custom_call.1
$region0: #{tpu_custom_call.1}
  #allocation0 [shape = 'u32[]', space=smem, size = 0x4, offset = 0x4, fixed_abs, tag = 'smem constant byte address 0x4 - core index']
  #allocation1 [shape = 'u32[144,128]{1,0:T(1,128)}', space=vmem, size = 0x12000, scoped, tag = 'internal scratch']
  %s0 = inlined_call_operand.vmem [shape: f32[5], index: 0, kind: input, shape index: {}]
  %s1 = inlined_call_operand.vmem [shape: f32[128,32], index: 1, kind: input, shape index: {}]
  %s2 = inlined_call_operand.vmem [shape: f32[128,32], index: 2, kind: input, shape index: {}]
  %s3 = inlined_call_operand.vmem [shape: f32[128,1], index: 3, kind: input, shape index: {}]
  %s4 = inlined_call_operand.vmem [shape: f32[1,128], index: 4, kind: input, shape index: {}]
  %s5 = inlined_call_operand.hbm [shape: f32[128,128], index: 5, kind: output, shape index: {}]
  %s6 = sld [smem:[#allocation0]]
  $region34: #{tpu_custom_call.1} parent=0
    _
  %s8 = ssub.s32 1, %s6
  %s9 = scalar_select 0, %s8, %s6
  $region1: #{tpu_custom_call.1} parent=0
    #allocation2 [shape = 'u8[512]{0}', space=smem, size = 0x200, scoped, tag = 'input window, operand 0, single buffered']
    #allocation3 [shape = 's32[1]{0}', space=sflag, size = 0x4, scoped, tag = 'scoped memory for tpu_custom_call.1']
    #allocation4 [shape = 's32[1]{0}', space=sflag, size = 0x4, scoped, tag = 'scoped memory for tpu_custom_call.1']
    #allocation5 [shape = 'u8[65536]{0}', space=vmem, size = 0x10000, scoped, tag = 'output window, operand 0, single buffered']
    %10 = vsyncpa [#allocation4], 0
    %11 = vsyncpa [#allocation3], 0
    // Predicated region
    $region2: #{tpu_custom_call.1} parent=1 // pred_check
      _
    $region3: #{tpu_custom_call.1} parent=1 // pred_check_branch
      %13 = sbr.rel (0) target = $region5
    $region4: #{tpu_custom_call.1} parent=1 // pred_region
      %s15 = ssub.s32 16, 16
      %16 = vsyncadd [#allocation4], %s15
      %s18 = sshll.u32 %s0, 4
      %s19 = int_to_ptr.vmem [resolvable:$true] %s18
      %21 = dma.vmem_to_smem %s19, 16, [#allocation2], [#allocation4]
    $region5: #{tpu_custom_call.1} parent=1 // pred_fallthru
      _
    // Predicated region
    $region6: #{tpu_custom_call.1} parent=1 // pred_check
      _
    $region7: #{tpu_custom_call.1} parent=1 // pred_check_branch
      %23 = sbr.rel (0) target = $region9
    $region8: #{tpu_custom_call.1} parent=1 // pred_region
      _
    $region9: #{tpu_custom_call.1} parent=1 // pred_fallthru
      _
    // Predicated region
    $region10: #{tpu_custom_call.1} parent=1 // pred_check
      _
    $region11: #{tpu_custom_call.1} parent=1 // pred_check_branch
      %25 = sbr.rel (0) target = $region13
    $region12: #{tpu_custom_call.1} parent=1 // pred_region
      _
    $region13: #{tpu_custom_call.1} parent=1 // pred_fallthru
      _
    // Predicated region
    $region14: #{tpu_custom_call.1} parent=1 // pred_check
      _
    $region15: #{tpu_custom_call.1} parent=1 // pred_check_branch
      %27 = sbr.rel (0) target = $region17
    $region16: #{tpu_custom_call.1} parent=1 // pred_region
      _
    $region17: #{tpu_custom_call.1} parent=1 // pred_fallthru
      _
    // Predicated region
    $region18: #{tpu_custom_call.1} parent=1 // pred_check
      _
    $region19: #{tpu_custom_call.1} parent=1 // pred_check_branch
      %29 = sbr.rel (0) target = $region21
    $region20: #{tpu_custom_call.1} parent=1 // pred_region
      _
    $region21: #{tpu_custom_call.1} parent=1 // pred_fallthru
      _
    // Predicated region
    $region22: #{tpu_custom_call.1} parent=1 // pred_check
      _
    $region23: #{tpu_custom_call.1} parent=1 // pred_check_branch
      %31 = sbr.rel (0) target = $region25
    $region24: #{tpu_custom_call.1} parent=1 // pred_region
      %32 = dma.done [#allocation4], 16
    $region25: #{tpu_custom_call.1} parent=1 // pred_fallthru
      _
    %33 = sfence
    %v34 = vld [vmem:[%s1] sm:$0xff]
    %v35 = vld [vmem:[%s1 + $0x8] sm:$0xff]
    %v36 = vld [vmem:[%s1 + $0x10] sm:$0xff]
    %v37 = vld [vmem:[%s1 + $0x18] sm:$0xff]
    %v38 = vld [vmem:[%s1 + $0x20] sm:$0xff]
    %v39 = vld [vmem:[%s1 + $0x28] sm:$0xff]
    %v40 = vld [vmem:[%s1 + $0x30] sm:$0xff]
    %v41 = vld [vmem:[%s1 + $0x38] sm:$0xff]
    %v42 = vld [vmem:[%s1 + $0x40] sm:$0xff]
    %v43 = vld [vmem:[%s1 + $0x48] sm:$0xff]
    %v44 = vld [vmem:[%s1 + $0x50] sm:$0xff]
    %v45 = vld [vmem:[%s1 + $0x58] sm:$0xff]
    %v46 = vld [vmem:[%s1 + $0x60] sm:$0xff]
    %v47 = vld [vmem:[%s1 + $0x68] sm:$0xff]
    %v48 = vld [vmem:[%s1 + $0x70] sm:$0xff]
    %v49 = vld [vmem:[%s1 + $0x78] sm:$0xff]
    %v50 = vld [vmem:[%s2] sm:$0xff]
    %v51 = vld [vmem:[%s2 + $0x8] sm:$0xff]
    %v52 = vld [vmem:[%s2 + $0x10] sm:$0xff]
    %v53 = vld [vmem:[%s2 + $0x18] sm:$0xff]
    %v54 = vld [vmem:[%s2 + $0x20] sm:$0xff]
    %v55 = vld [vmem:[%s2 + $0x28] sm:$0xff]
    %v56 = vld [vmem:[%s2 + $0x30] sm:$0xff]
    %v57 = vld [vmem:[%s2 + $0x38] sm:$0xff]
    %v58 = vld [vmem:[%s2 + $0x40] sm:$0xff]
    %v59 = vld [vmem:[%s2 + $0x48] sm:$0xff]
    %v60 = vld [vmem:[%s2 + $0x50] sm:$0xff]
    %v61 = vld [vmem:[%s2 + $0x58] sm:$0xff]
    %v62 = vld [vmem:[%s2 + $0x60] sm:$0xff]
    %v63 = vld [vmem:[%s2 + $0x68] sm:$0xff]
    %v64 = vld [vmem:[%s2 + $0x70] sm:$0xff]
    %v65 = vld [vmem:[%s2 + $0x78] sm:$0xff]
    %v66 = vld [vmem:[%s3] sm:$0xff]
    %v67 = vld [vmem:[%s3 + $0x8] sm:$0xff]
    %v68 = vld [vmem:[%s3 + $0x10] sm:$0xff]
    %v69 = vld [vmem:[%s3 + $0x18] sm:$0xff]
    %v70 = vld [vmem:[%s3 + $0x20] sm:$0xff]
    %v71 = vld [vmem:[%s3 + $0x28] sm:$0xff]
    %v72 = vld [vmem:[%s3 + $0x30] sm:$0xff]
    %v73 = vld [vmem:[%s3 + $0x38] sm:$0xff]
    %v74 = vld [vmem:[%s3 + $0x40] sm:$0xff]
    %v75 = vld [vmem:[%s3 + $0x48] sm:$0xff]
    %v76 = vld [vmem:[%s3 + $0x50] sm:$0xff]
    %v77 = vld [vmem:[%s3 + $0x58] sm:$0xff]
    %v78 = vld [vmem:[%s3 + $0x60] sm:$0xff]
    %v79 = vld [vmem:[%s3 + $0x68] sm:$0xff]
    %v80 = vld [vmem:[%s3 + $0x70] sm:$0xff]
    %v81 = vld [vmem:[%s3 + $0x78] sm:$0xff]
    %v82 = vld [vmem:[%s4] sm:$0x1]
    %vm83 = vcmask 261120
    %v85 = vsel %vm83, %v34, 0
    %v88 = vsel %vm83, %v35, 0
    %v91 = vsel %vm83, %v36, 0
    %v94 = vsel %vm83, %v37, 0
    %v97 = vsel %vm83, %v38, 0
    %v100 = vsel %vm83, %v39, 0
    %v103 = vsel %vm83, %v40, 0
    %v106 = vsel %vm83, %v41, 0
    %v109 = vsel %vm83, %v42, 0
    %v112 = vsel %vm83, %v43, 0
    %v115 = vsel %vm83, %v44, 0
    %v118 = vsel %vm83, %v45, 0
    %v121 = vsel %vm83, %v46, 0
    %v124 = vsel %vm83, %v47, 0
    %v127 = vsel %vm83, %v48, 0
    %v130 = vsel %vm83, %v49, 0
    %v133 = vsel %vm83, %v50, 0
    %v136 = vsel %vm83, %v51, 0
    %v139 = vsel %vm83, %v52, 0
    %v142 = vsel %vm83, %v53, 0
    %v145 = vsel %vm83, %v54, 0
    %v148 = vsel %vm83, %v55, 0
    %v151 = vsel %vm83, %v56, 0
    %v154 = vsel %vm83, %v57, 0
    %v157 = vsel %vm83, %v58, 0
    %v160 = vsel %vm83, %v59, 0
    %v163 = vsel %vm83, %v60, 0
    %v166 = vsel %vm83, %v61, 0
    %v169 = vsel %vm83, %v62, 0
    %v172 = vsel %vm83, %v63, 0
    %v175 = vsel %vm83, %v64, 0
    %v178 = vsel %vm83, %v65, 0
    %180 = vmatprep.subr.mxu0 0.0
    %181 = vmatpush1.xpose.msra.mxu0 %v133
    %182 = vmatprep.subr.mxu0 0.0
    %183 = vmatpush1.xpose.msra.mxu0 %v136
    %184 = vmatprep.subr.mxu0 0.0
    %185 = vmatpush1.xpose.msra.mxu0 %v139
    %186 = vmatprep.subr.mxu0 0.0
    %187 = vmatpush1.xpose.msra.mxu0 %v142
    %188 = vmatprep.subr.mxu0 0.0
    %189 = vmatpush1.xpose.msra.mxu0 %v145
    %190 = vmatprep.subr.mxu0 0.0
    %191 = vmatpush1.xpose.msra.mxu0 %v148
    %192 = vmatprep.subr.mxu0 0.0
    %193 = vmatpush1.xpose.msra.mxu0 %v151
    %194 = vmatprep.subr.mxu0 0.0
    %195 = vmatpush1.xpose.msra.mxu0 %v154
    %196 = vmatprep.subr.mxu0 0.0
    %197 = vmatpush1.xpose.msra.mxu0 %v157
    %198 = vmatprep.subr.mxu0 0.0
    %199 = vmatpush1.xpose.msra.mxu0 %v160
    %200 = vmatprep.subr.mxu0 0.0
    %201 = vmatpush1.xpose.msra.mxu0 %v163
    %202 = vmatprep.subr.mxu0 0.0
    %203 = vmatpush1.xpose.msra.mxu0 %v166
    %204 = vmatprep.subr.mxu0 0.0
    %205 = vmatpush1.xpose.msra.mxu0 %v169
    %206 = vmatprep.subr.mxu0 0.0
    %207 = vmatpush1.xpose.msra.mxu0 %v172
    %208 = vmatprep.subr.mxu0 0.0
    %209 = vmatpush1.xpose.msra.mxu0 %v175
    %210 = vmatprep.subr.mxu0 0.0
    %211 = vmatpush1.xpose.msra.mxu0 %v178
    %212 = vmatprep.subr.mxu0 0.0
    %213 = vmatpush1.xpose.msra.mxu0 0.0
    %214 = vmatprep.subr.mxu0 0.0
    %215 = vmatpush1.xpose.msra.mxu0 0.0
    %216 = vmatprep.subr.mxu0 0.0
    %217 = vmatpush1.xpose.msra.mxu0 0.0
    %218 = vmatprep.subr.mxu0 0.0
    %219 = vmatpush1.xpose.msra.mxu0 0.0
    %220 = vmatprep.subr.mxu0 0.0
    %221 = vmatpush1.xpose.msra.mxu0 0.0
    %222 = vmatprep.subr.mxu0 0.0
    %223 = vmatpush1.xpose.msra.mxu0 0.0
    %224 = vmatprep.subr.mxu0 0.0
    %225 = vmatpush1.xpose.msra.mxu0 0.0
    %226 = vmatprep.subr.mxu0 0.0
    %227 = vmatpush1.xpose.msra.mxu0 0.0
    %228 = vmatprep.subr.mxu0 0.0
    %229 = vmatpush1.xpose.msra.mxu0 0.0
    %230 = vmatprep.subr.mxu0 0.0
    %231 = vmatpush1.xpose.msra.mxu0 0.0
    %232 = vmatprep.subr.mxu0 0.0
    %233 = vmatpush1.xpose.msra.mxu0 0.0
    %234 = vmatprep.subr.mxu0 0.0
    %235 = vmatpush1.xpose.msra.mxu0 0.0
    %236 = vmatprep.subr.mxu0 0.0
    %237 = vmatpush1.xpose.msra.mxu0 0.0
    %238 = vmatprep.subr.mxu0 0.0
    %239 = vmatpush1.xpose.msra.mxu0 0.0
    %240 = vmatprep.subr.mxu0 0.0
    %241 = vmatpush1.xpose.msra.mxu0 0.0
    %242 = vmatprep.subr.mxu0 0.0
    %243 = vmatpush1.xpose.msra.mxu0 0.0
    %244 = vmatprep.mubr.f32.mxu0 0.0
    %245 = vmatmul.mubr.f32.gmra.mrb[0].mxu0 %v85
    %v246 = vpop.f32.mrb[0].mxu0
    %v247 = vadd.f32 0.0, %v246
    %v248 = vpop.f32.mrb[0].mxu0
    %249 = vmatprep.mubr.f32.mxu0 0.0
    %250 = vmatmul.mubr.f32.gmra.mrb[0].mxu0 %v88
    %v251 = vpop.f32.mrb[0].mxu0
    %v252 = vadd.f32 0.0, %v251
    %v253 = vpop.f32.mrb[0].mxu0
    %254 = vmatprep.mubr.f32.mxu0 0.0
    %255 = vmatmul.mubr.f32.gmra.mrb[0].mxu0 %v91
    %v256 = vpop.f32.mrb[0].mxu0
    %v257 = vadd.f32 0.0, %v256
    %v258 = vpop.f32.mrb[0].mxu0
    %259 = vmatprep.mubr.f32.mxu0 0.0
    %260 = vmatmul.mubr.f32.gmra.mrb[0].mxu0 %v94
    %v261 = vpop.f32.mrb[0].mxu0
    %v262 = vadd.f32 0.0, %v261
    %v263 = vpop.f32.mrb[0].mxu0
    %264 = vmatprep.mubr.f32.mxu0 0.0
    %265 = vmatmul.mubr.f32.gmra.mrb[0].mxu0 %v97
    %v266 = vpop.f32.mrb[0].mxu0
    %v267 = vadd.f32 0.0, %v266
    %v268 = vpop.f32.mrb[0].mxu0
    %269 = vmatprep.mubr.f32.mxu0 0.0
    %270 = vmatmul.mubr.f32.gmra.mrb[0].mxu0 %v100
    %v271 = vpop.f32.mrb[0].mxu0
    %v272 = vadd.f32 0.0, %v271
    %v273 = vpop.f32.mrb[0].mxu0
    %274 = vmatprep.mubr.f32.mxu0 0.0
    %275 = vmatmul.mubr.f32.gmra.mrb[0].mxu0 %v103
    %v276 = vpop.f32.mrb[0].mxu0
    %v277 = vadd.f32 0.0, %v276
    %v278 = vpop.f32.mrb[0].mxu0
    %279 = vmatprep.mubr.f32.mxu0 0.0
    %280 = vmatmul.mubr.f32.gmra.mrb[0].mxu0 %v106
    %v281 = vpop.f32.mrb[0].mxu0
    %v282 = vadd.f32 0.0, %v281
    %v283 = vpop.f32.mrb[0].mxu0
    %284 = vmatprep.mubr.f32.mxu0 0.0
    %285 = vmatmul.mubr.f32.gmra.mrb[0].mxu0 %v109
    %v286 = vpop.f32.mrb[0].mxu0
    %v287 = vadd.f32 0.0, %v286
    %v288 = vpop.f32.mrb[0].mxu0
    %289 = vmatprep.mubr.f32.mxu0 0.0
    %290 = vmatmul.mubr.f32.gmra.mrb[0].mxu0 %v112
    %v291 = vpop.f32.mrb[0].mxu0
    %v292 = vadd.f32 0.0, %v291
    %v293 = vpop.f32.mrb[0].mxu0
    %294 = vmatprep.mubr.f32.mxu0 0.0
    %295 = vmatmul.mubr.f32.gmra.mrb[0].mxu0 %v115
    %v296 = vpop.f32.mrb[0].mxu0
    %v297 = vadd.f32 0.0, %v296
    %v298 = vpop.f32.mrb[0].mxu0
    %299 = vmatprep.mubr.f32.mxu0 0.0
    %300 = vmatmul.mubr.f32.gmra.mrb[0].mxu0 %v118
    %v301 = vpop.f32.mrb[0].mxu0
    %v302 = vadd.f32 0.0, %v301
    %v303 = vpop.f32.mrb[0].mxu0
    %304 = vmatprep.mubr.f32.mxu0 0.0
    %305 = vmatmul.mubr.f32.gmra.mrb[0].mxu0 %v121
    %v306 = vpop.f32.mrb[0].mxu0
    %v307 = vadd.f32 0.0, %v306
    %v308 = vpop.f32.mrb[0].mxu0
    %309 = vmatprep.mubr.f32.mxu0 0.0
    %310 = vmatmul.mubr.f32.gmra.mrb[0].mxu0 %v124
    %v311 = vpop.f32.mrb[0].mxu0
    %v312 = vadd.f32 0.0, %v311
    %v313 = vpop.f32.mrb[0].mxu0
    %314 = vmatprep.mubr.f32.mxu0 0.0
    %315 = vmatmul.mubr.f32.gmra.mrb[0].mxu0 %v127
    %v316 = vpop.f32.mrb[0].mxu0
    %v317 = vadd.f32 0.0, %v316
    %v318 = vpop.f32.mrb[0].mxu0
    %319 = vmatprep.mubr.f32.mxu0 0.0
    %320 = vmatmul.mubr.f32.gmra.mrb[0].mxu0 %v130
    %v321 = vpop.f32.mrb[0].mxu0
    %v322 = vadd.f32 0.0, %v321
    %v323 = vpop.f32.mrb[0].mxu0
    %324 = vdwg.mxu0
    %v325 = vmul.f32 %v247, 2.0
    %v326 = vmul.f32 %v252, 2.0
    %v327 = vmul.f32 %v257, 2.0
    %v328 = vmul.f32 %v262, 2.0
    %v329 = vmul.f32 %v267, 2.0
    %v330 = vmul.f32 %v272, 2.0
    %v331 = vmul.f32 %v277, 2.0
    %v332 = vmul.f32 %v282, 2.0
    %v333 = vmul.f32 %v287, 2.0
    %v334 = vmul.f32 %v292, 2.0
    %v335 = vmul.f32 %v297, 2.0
    %v336 = vmul.f32 %v302, 2.0
    %v337 = vmul.f32 %v307, 2.0
    %v338 = vmul.f32 %v312, 2.0
    %v339 = vmul.f32 %v317, 2.0
    %v340 = vmul.f32 %v322, 2.0
    %342 = vset.pattern.permute.xlu0 0
    %343 = vperm.xlu0 %342, %v66
    %v344 = vpop.permute.xlu0 %343
    %347 = vset.pattern.permute.xlu0 0
    %348 = vperm.xlu0 %347, %v67
    %v349 = vpop.permute.xlu0 %348
    %352 = vset.pattern.permute.xlu0 0
    %353 = vperm.xlu0 %352, %v68
    %v354 = vpop.permute.xlu0 %353
    %357 = vset.pattern.permute.xlu0 0
    %358 = vperm.xlu0 %357, %v69
    %v359 = vpop.permute.xlu0 %358
    %362 = vset.pattern.permute.xlu0 0
    %363 = vperm.xlu0 %362, %v70
    %v364 = vpop.permute.xlu0 %363
    %367 = vset.pattern.permute.xlu0 0
    %368 = vperm.xlu0 %367, %v71
    %v369 = vpop.permute.xlu0 %368
    %372 = vset.pattern.permute.xlu0 0
    %373 = vperm.xlu0 %372, %v72
    %v374 = vpop.permute.xlu0 %373
    %377 = vset.pattern.permute.xlu0 0
    %378 = vperm.xlu0 %377, %v73
    %v379 = vpop.permute.xlu0 %378
    %382 = vset.pattern.permute.xlu0 0
    %383 = vperm.xlu0 %382, %v74
    %v384 = vpop.permute.xlu0 %383
    %387 = vset.pattern.permute.xlu0 0
    %388 = vperm.xlu0 %387, %v75
    %v389 = vpop.permute.xlu0 %388
    %392 = vset.pattern.permute.xlu0 0
    %393 = vperm.xlu0 %392, %v76
    %v394 = vpop.permute.xlu0 %393
    %397 = vset.pattern.permute.xlu0 0
    %398 = vperm.xlu0 %397, %v77
    %v399 = vpop.permute.xlu0 %398
    %402 = vset.pattern.permute.xlu0 0
    %403 = vperm.xlu0 %402, %v78
    %v404 = vpop.permute.xlu0 %403
    %407 = vset.pattern.permute.xlu0 0
    %408 = vperm.xlu0 %407, %v79
    %v409 = vpop.permute.xlu0 %408
    %412 = vset.pattern.permute.xlu0 0
    %413 = vperm.xlu0 %412, %v80
    %v414 = vpop.permute.xlu0 %413
    %417 = vset.pattern.permute.xlu0 0
    %418 = vperm.xlu0 %417, %v81
    %v419 = vpop.permute.xlu0 %418
    %v421 = vsub.f32 %v325, %v344
    %v422 = vsub.f32 %v326, %v349
    %v423 = vsub.f32 %v327, %v354
    %v424 = vsub.f32 %v328, %v359
    %v425 = vsub.f32 %v329, %v364
    %v426 = vsub.f32 %v330, %v369
    %v427 = vsub.f32 %v331, %v374
    %v428 = vsub.f32 %v332, %v379
    %v429 = vsub.f32 %v333, %v384
    %v430 = vsub.f32 %v334, %v389
    %v431 = vsub.f32 %v335, %v394
    %v432 = vsub.f32 %v336, %v399
    %v433 = vsub.f32 %v337, %v404
    %v434 = vsub.f32 %v338, %v409
    %v435 = vsub.f32 %v339, %v414
    %v436 = vsub.f32 %v340, %v419
    %v438 = vlaneseq
    %v439 = vshrl.u32 %v438, 7
    %v440 = vsub.s32 0, %v439
    %v441 = vrot.slane %v82, %v440
    %v443 = vsub.f32 %v421, %v441
    %v444 = vsub.f32 %v422, %v441
    %v445 = vsub.f32 %v423, %v441
    %v446 = vsub.f32 %v424, %v441
    %v447 = vsub.f32 %v425, %v441
    %v448 = vsub.f32 %v426, %v441
    %v449 = vsub.f32 %v427, %v441
    %v450 = vsub.f32 %v428, %v441
    %v451 = vsub.f32 %v429, %v441
    %v452 = vsub.f32 %v430, %v441
    %v453 = vsub.f32 %v431, %v441
    %v454 = vsub.f32 %v432, %v441
    %v455 = vsub.f32 %v433, %v441
    %v456 = vsub.f32 %v434, %v441
    %v457 = vsub.f32 %v435, %v441
    %v458 = vsub.f32 %v436, %v441
    %v459 = vmin.f32 %v443, 0.0
    %v460 = vmin.f32 %v444, 0.0
    %v461 = vmin.f32 %v445, 0.0
    %v462 = vmin.f32 %v446, 0.0
    %v463 = vmin.f32 %v447, 0.0
    %v464 = vmin.f32 %v448, 0.0
    %v465 = vmin.f32 %v449, 0.0
    %v466 = vmin.f32 %v450, 0.0
    %v467 = vmin.f32 %v451, 0.0
    %v468 = vmin.f32 %v452, 0.0
    %v469 = vmin.f32 %v453, 0.0
    %v470 = vmin.f32 %v454, 0.0
    %v471 = vmin.f32 %v455, 0.0
    %v472 = vmin.f32 %v456, 0.0
    %v473 = vmin.f32 %v457, 0.0
    %v474 = vmin.f32 %v458, 0.0
    %s475 = sld [smem:[#allocation2 + $0x4]]
    %v476 = vstv %s475
    %v477 = vmul.f32 %v459, %v476
    %v478 = vmul.f32 %v460, %v476
    %v479 = vmul.f32 %v461, %v476
    %v480 = vmul.f32 %v462, %v476
    %v481 = vmul.f32 %v463, %v476
    %v482 = vmul.f32 %v464, %v476
    %v483 = vmul.f32 %v465, %v476
    %v484 = vmul.f32 %v466, %v476
    %v485 = vmul.f32 %v467, %v476
    %v486 = vmul.f32 %v468, %v476
    %v487 = vmul.f32 %v469, %v476
    %v488 = vmul.f32 %v470, %v476
    %v489 = vmul.f32 %v471, %v476
    %v490 = vmul.f32 %v472, %v476
    %v491 = vmul.f32 %v473, %v476
    %v492 = vmul.f32 %v474, %v476
    %v493 = vmul.f32 %v477, 1.442695
    %v494 = vpow.pop %v493
    %v495 = vmul.f32 %v478, 1.442695
    %v496 = vpow.pop %v495
    %v497 = vmul.f32 %v479, 1.442695
    %v498 = vpow.pop %v497
    %v499 = vmul.f32 %v480, 1.442695
    %v500 = vpow.pop %v499
    %v501 = vmul.f32 %v481, 1.442695
    %v502 = vpow.pop %v501
    %v503 = vmul.f32 %v482, 1.442695
    %v504 = vpow.pop %v503
    %v505 = vmul.f32 %v483, 1.442695
    %v506 = vpow.pop %v505
    %v507 = vmul.f32 %v484, 1.442695
    %v508 = vpow.pop %v507
    %v509 = vmul.f32 %v485, 1.442695
    %v510 = vpow.pop %v509
    %v511 = vmul.f32 %v486, 1.442695
    %v512 = vpow.pop %v511
    %v513 = vmul.f32 %v487, 1.442695
    %v514 = vpow.pop %v513
    %v515 = vmul.f32 %v488, 1.442695
    %v516 = vpow.pop %v515
    %v517 = vmul.f32 %v489, 1.442695
    %v518 = vpow.pop %v517
    %v519 = vmul.f32 %v490, 1.442695
    %v520 = vpow.pop %v519
    %v521 = vmul.f32 %v491, 1.442695
    %v522 = vpow.pop %v521
    %v523 = vmul.f32 %v492, 1.442695
    %v524 = vpow.pop %v523
    %v525 = vmul.f32 %v494, %v494
    %v526 = vmul.f32 %v496, %v496
    %v527 = vmul.f32 %v498, %v498
    %v528 = vmul.f32 %v500, %v500
    %v529 = vmul.f32 %v502, %v502
    %v530 = vmul.f32 %v504, %v504
    %v531 = vmul.f32 %v506, %v506
    %v532 = vmul.f32 %v508, %v508
    %v533 = vmul.f32 %v510, %v510
    %v534 = vmul.f32 %v512, %v512
    %v535 = vmul.f32 %v514, %v514
    %v536 = vmul.f32 %v516, %v516
    %v537 = vmul.f32 %v518, %v518
    %v538 = vmul.f32 %v520, %v520
    %v539 = vmul.f32 %v522, %v522
    %v540 = vmul.f32 %v524, %v524
    %v541 = vadd.f32 %v494, %v525
    %v542 = vadd.f32 %v496, %v526
    %v543 = vadd.f32 %v498, %v527
    %v544 = vadd.f32 %v500, %v528
    %v545 = vadd.f32 %v502, %v529
    %v546 = vadd.f32 %v504, %v530
    %v547 = vadd.f32 %v506, %v531
    %v548 = vadd.f32 %v508, %v532
    %v549 = vadd.f32 %v510, %v533
    %v550 = vadd.f32 %v512, %v534
    %v551 = vadd.f32 %v514, %v535
    %v552 = vadd.f32 %v516, %v536
    %v553 = vadd.f32 %v518, %v537
    %v554 = vadd.f32 %v520, %v538
    %v555 = vadd.f32 %v522, %v539
    %v556 = vadd.f32 %v524, %v540
    %v557 = vmul.f32 %v525, %v525
    %v558 = vmul.f32 %v526, %v526
    %v559 = vmul.f32 %v527, %v527
    %v560 = vmul.f32 %v528, %v528
    %v561 = vmul.f32 %v529, %v529
    %v562 = vmul.f32 %v530, %v530
    %v563 = vmul.f32 %v531, %v531
    %v564 = vmul.f32 %v532, %v532
    %v565 = vmul.f32 %v533, %v533
    %v566 = vmul.f32 %v534, %v534
    %v567 = vmul.f32 %v535, %v535
    %v568 = vmul.f32 %v536, %v536
    %v569 = vmul.f32 %v537, %v537
    %v570 = vmul.f32 %v538, %v538
    %v571 = vmul.f32 %v539, %v539
    %v572 = vmul.f32 %v540, %v540
    %v573 = vadd.f32 %v541, %v557
    %v574 = vadd.f32 %v542, %v558
    %v575 = vadd.f32 %v543, %v559
    %v576 = vadd.f32 %v544, %v560
    %v577 = vadd.f32 %v545, %v561
    %v578 = vadd.f32 %v546, %v562
    %v579 = vadd.f32 %v547, %v563
    %v580 = vadd.f32 %v548, %v564
    %v581 = vadd.f32 %v549, %v565
    %v582 = vadd.f32 %v550, %v566
    %v583 = vadd.f32 %v551, %v567
    %v584 = vadd.f32 %v552, %v568
    %v585 = vadd.f32 %v553, %v569
    %v586 = vadd.f32 %v554, %v570
    %v587 = vadd.f32 %v555, %v571
    %v588 = vadd.f32 %v556, %v572
    %v589 = vmul.f32 %v557, %v557
    %v590 = vmul.f32 %v558, %v558
    %v591 = vmul.f32 %v559, %v559
    %v592 = vmul.f32 %v560, %v560
    %v593 = vmul.f32 %v561, %v561
    %v594 = vmul.f32 %v562, %v562
    %v595 = vmul.f32 %v563, %v563
    %v596 = vmul.f32 %v564, %v564
    %v597 = vmul.f32 %v565, %v565
    %v598 = vmul.f32 %v566, %v566
    %v599 = vmul.f32 %v567, %v567
    %v600 = vmul.f32 %v568, %v568
    %v601 = vmul.f32 %v569, %v569
    %v602 = vmul.f32 %v570, %v570
    %v603 = vmul.f32 %v571, %v571
    %v604 = vmul.f32 %v572, %v572
    %v605 = vadd.f32 %v573, %v589
    %v606 = vadd.f32 %v574, %v590
    %v607 = vadd.f32 %v575, %v591
    %v608 = vadd.f32 %v576, %v592
    %v609 = vadd.f32 %v577, %v593
    %v610 = vadd.f32 %v578, %v594
    %v611 = vadd.f32 %v579, %v595
    %v612 = vadd.f32 %v580, %v596
    %v613 = vadd.f32 %v581, %v597
    %v614 = vadd.f32 %v582, %v598
    %v615 = vadd.f32 %v583, %v599
    %v616 = vadd.f32 %v584, %v600
    %v617 = vadd.f32 %v585, %v601
    %v618 = vadd.f32 %v586, %v602
    %v619 = vadd.f32 %v587, %v603
    %v620 = vadd.f32 %v588, %v604
    %v621 = vmul.f32 %v589, %v589
    %v622 = vmul.f32 %v590, %v590
    %v623 = vmul.f32 %v591, %v591
    %v624 = vmul.f32 %v592, %v592
    %v625 = vmul.f32 %v593, %v593
    %v626 = vmul.f32 %v594, %v594
    %v627 = vmul.f32 %v595, %v595
    %v628 = vmul.f32 %v596, %v596
    %v629 = vmul.f32 %v597, %v597
    %v630 = vmul.f32 %v598, %v598
    %v631 = vmul.f32 %v599, %v599
    %v632 = vmul.f32 %v600, %v600
    %v633 = vmul.f32 %v601, %v601
    %v634 = vmul.f32 %v602, %v602
    %v635 = vmul.f32 %v603, %v603
    %v636 = vmul.f32 %v604, %v604
    %v637 = vadd.f32 %v605, %v621
    %v638 = vadd.f32 %v606, %v622
    %v639 = vadd.f32 %v607, %v623
    %v640 = vadd.f32 %v608, %v624
    %v641 = vadd.f32 %v609, %v625
    %v642 = vadd.f32 %v610, %v626
    %v643 = vadd.f32 %v611, %v627
    %v644 = vadd.f32 %v612, %v628
    %v645 = vadd.f32 %v613, %v629
    %v646 = vadd.f32 %v614, %v630
    %v647 = vadd.f32 %v615, %v631
    %v648 = vadd.f32 %v616, %v632
    %v649 = vadd.f32 %v617, %v633
    %v650 = vadd.f32 %v618, %v634
    %v651 = vadd.f32 %v619, %v635
    %v652 = vadd.f32 %v620, %v636
    %653 = vst [vmem:[#allocation5] sm:$0xff] %v637
    %654 = vst [vmem:[#allocation5 + $0x8] sm:$0xff] %v638
    %655 = vst [vmem:[#allocation5 + $0x10] sm:$0xff] %v639
    %656 = vst [vmem:[#allocation5 + $0x18] sm:$0xff] %v640
    %657 = vst [vmem:[#allocation5 + $0x20] sm:$0xff] %v641
    %658 = vst [vmem:[#allocation5 + $0x28] sm:$0xff] %v642
    %659 = vst [vmem:[#allocation5 + $0x30] sm:$0xff] %v643
    %660 = vst [vmem:[#allocation5 + $0x38] sm:$0xff] %v644
    %661 = vst [vmem:[#allocation5 + $0x40] sm:$0xff] %v645
    %662 = vst [vmem:[#allocation5 + $0x48] sm:$0xff] %v646
    %663 = vst [vmem:[#allocation5 + $0x50] sm:$0xff] %v647
    %664 = vst [vmem:[#allocation5 + $0x58] sm:$0xff] %v648
    %665 = vst [vmem:[#allocation5 + $0x60] sm:$0xff] %v649
    %666 = vst [vmem:[#allocation5 + $0x68] sm:$0xff] %v650
    %667 = vst [vmem:[#allocation5 + $0x70] sm:$0xff] %v651
    %668 = vst [vmem:[#allocation5 + $0x78] sm:$0xff] %v652
    // Predicated region
    $region26: #{tpu_custom_call.1} parent=1 // pred_check
      _
    $region27: #{tpu_custom_call.1} parent=1 // pred_check_branch
      %670 = sbr.rel (0) target = $region29
    $region28: #{tpu_custom_call.1} parent=1 // pred_region
      %s672 = ssub.s32 2048, 2048
      %673 = vsyncadd [#allocation3], %s672
      %s674 = sshll.u32 [#allocation5], 4
      %s675 = int_to_ptr.vmem [resolvable:$true] %s674
      %680 = dma.vmem_to_hbm [thread:$0]  %s675, 2048, %s5, [#allocation3], 128, 128, 8
    $region29: #{tpu_custom_call.1} parent=1 // pred_fallthru
      _
    // Predicated region
    $region30: #{tpu_custom_call.1} parent=1 // pred_check
      _
    $region31: #{tpu_custom_call.1} parent=1 // pred_check_branch
      %682 = sbr.rel (0) target = $region33
    $region32: #{tpu_custom_call.1} parent=1 // pred_region
      %683 = dma.done [#allocation3], 2048
    $region33: #{tpu_custom_call.1} parent=1 // pred_fallthru
      _
    %684 = vsyncpa [#allocation3], 1
    %685 = vsyncpa [#allocation4], 1

</llo_original>
